<compile_context>
chip_gen: v7x
topology: tpu7x:2x2x1
jax: 0.10.0
libtpu: 0.0.40
codegen_flags: <defaults>
</compile_context>

<pallas_src>
import math

import jax
import jax.numpy as jnp
from jax.experimental import pallas as pl
from jax.experimental.pallas import tpu as pltpu


def _round_up(n, m):
    return ((n + m - 1) // m) * m


def _pick_batch_tile(B):
    # Largest power-of-two divisor of B up to 8 (avoids ragged batch blocks).
    for cand in (8, 4, 2):
        if B % cand == 0:
            return cand
    return 1


def _make_cond_conv_kernel(*, TB, E, K, C_in, C_out, groups, stride, dilation,
                           padding, W, W_in_pad, W_out_pad):
    C_in_g = C_in // groups
    C_out_g = C_out // groups
    KC1 = K * C_in_g + 1            # im2col rows per group (+1 = bias "ones" tap)

    def tap_slice(k):
        lo = k * dilation
        if stride == 1:
            return pl.ds(lo, W_out_pad)
        return pl.ds(lo, W_out_pad, stride=stride)

    def kernel(x_ref, fcw_ref, fcb_ref, waug_ref, o_ref,
               xp_ref, xcol_ref, wm_ref):
        xdtype = x_ref.dtype

        # ---- 1) stage zero-padded activations in VMEM (single HBM read of x).
        # Edges are re-zeroed every step (megacore-safe: no cross-step carry).
        if padding > 0:
            xp_ref[:, :, :padding] = jnp.zeros((TB, C_in, padding), xdtype)
        if W_in_pad > padding + W:
            xp_ref[:, :, padding + W:] = jnp.zeros(
                (TB, C_in, W_in_pad - padding - W), xdtype)
        xp_ref[:, :, padding:padding + W] = x_ref[...]

        # ---- 2) routing: AdaptiveAvgPool1d(1) + Linear + sigmoid (f32, tiny).
        m = jnp.mean(x_ref[...].astype(jnp.float32), axis=2)          # (TB, C_in)
        logits = jnp.dot(m, fcw_ref[...],
                         preferred_element_type=jnp.float32) + fcb_ref[...]
        r = jax.nn.sigmoid(logits)                                     # (TB, E)

        # ---- 3) expert mixing: ONE matmul, bias folded in as the last column
        #        of each output channel's row.
        wmix = jnp.dot(r, waug_ref[...].astype(jnp.float32),
                       preferred_element_type=jnp.float32)   # (TB, C_out*KC1)
        # Manual "reshape" to (TB, C_out, KC1) via a VMEM scratch (robust: only
        # static lane slices + stores, no in-kernel vector reshape).
        for co in range(C_out):
            wm_ref[:, co, :] = (
                wmix[:, co * KC1:(co + 1) * KC1].astype(wm_ref.dtype))

        # ---- 4) im2col slab for all TB samples (bias "ones" tap appended),
        #        then ONE batched matmul per group with lane-dense
        #        (W_out_pad) output stores.
        ones_row = jnp.ones((TB, W_out_pad), xdtype)          # hoisted once
        for g in range(groups):
            lo_c = g * C_in_g
            for k in range(K):
                xcol_ref[g, :, k * C_in_g:(k + 1) * C_in_g, :] = (
                    xp_ref[:, lo_c:lo_c + C_in_g, tap_slice(k)])
            xcol_ref[g, :, K * C_in_g, :] = ones_row

        for g in range(groups):
            wg = wm_ref[:, g * C_out_g:(g + 1) * C_out_g, :]  # (TB, C_out_g, KC1)
            xc = xcol_ref[g]                                   # (TB, KC1, W_out_pad)
            acc = jnp.einsum('boj,bjw->bow', wg, xc,
                             preferred_element_type=jnp.float32)
            o_ref[:, g * C_out_g:(g + 1) * C_out_g, :] = acc.astype(o_ref.dtype)

    return kernel


def cond_conv1d(x, fc_w, fc_b, weight, bias, *, stride=1, padding=0,
                dilation=1, groups=1):
    """Pallas implementation of CondConv1d.forward.

    x:      (B, C_in, W)
    fc_w:   (E, C_in)        routing fc weight
    fc_b:   (E,)             routing fc bias
    weight: (E, C_out, C_in // groups, K) expert conv weights
    bias:   (E, C_out) or None            expert conv biases
    """
    B, C_in, W = x.shape
    E, C_out, C_in_g, K = weight.shape
    assert C_in_g == C_in // groups and C_out % groups == 0
    if bias is None:
        bias = jnp.zeros((E, C_out), weight.dtype)

    W_out = (W + 2 * padding - dilation * (K - 1) - 1) // stride + 1
    W_out_pad = _round_up(max(W_out, 1), 128)        # lane-dense output stores
    span = (W_out_pad - 1) * stride + dilation * (K - 1) + 1
    W_in_pad = _round_up(max(span, W + 2 * padding), 128)

    TB = _pick_batch_tile(B)
    KC1 = K * C_in_g + 1

    # Expert weights rearranged once (host/XLA side, tiny): tap-major layout
    # plus the bias appended as an extra "ones" tap column.
    #   waug[e, co, k*C_in_g + ci] = weight[e, co, ci, k]
    #   waug[e, co, K*C_in_g]      = bias[e, co]
    w_t = jnp.transpose(weight, (0, 1, 3, 2)).reshape(E, C_out, K * C_in_g)
    waug = jnp.concatenate([w_t, bias[:, :, None].astype(w_t.dtype)], axis=2)
    waug = waug.reshape(E, C_out * KC1)

    fcw_t = fc_w.T.astype(jnp.float32)               # (C_in, E)
    fcb2 = fc_b.reshape(1, E).astype(jnp.float32)    # (1, E)

    kernel = _make_cond_conv_kernel(
        TB=TB, E=E, K=K, C_in=C_in, C_out=C_out, groups=groups, stride=stride,
        dilation=dilation, padding=padding, W=W, W_in_pad=W_in_pad,
        W_out_pad=W_out_pad)

    out_pad = pl.pallas_call(
        kernel,
        out_shape=jax.ShapeDtypeStruct((B, C_out, W_out_pad), x.dtype),
        grid=(B // TB,),
        in_specs=[
            pl.BlockSpec((TB, C_in, W), lambda i: (i, 0, 0)),        # x (read once)
            pl.BlockSpec((C_in, E), lambda i: (0, 0)),               # fc weight^T
            pl.BlockSpec((1, E), lambda i: (0, 0)),                  # fc bias
            pl.BlockSpec((E, C_out * KC1), lambda i: (0, 0)),        # experts+bias
        ],
        out_specs=pl.BlockSpec((TB, C_out, W_out_pad), lambda i: (i, 0, 0)),
        scratch_shapes=[
            pltpu.VMEM((TB, C_in, W_in_pad), x.dtype),               # padded x
            pltpu.VMEM((groups, TB, KC1, W_out_pad), x.dtype),       # im2col slab
            pltpu.VMEM((TB, C_out, KC1), x.dtype),                   # mixed weights
        ],
        compiler_params=pltpu.CompilerParams(
            dimension_semantics=("parallel",)),                      # megacore-safe
    )(x, fcw_t, fcb2, waug)

    return out_pad[:, :, :W_out]


def reference(x, fc_w, fc_b, weight, bias, stride, padding, dilation):
    # Pure-JAX replica of the PyTorch forward (groups == 1).
    B, C_in, W = x.shape
    E, C_out, C_in_g, K = weight.shape
    r = jax.nn.sigmoid(jnp.mean(x, axis=2) @ fc_w.T + fc_b)
    cw = (r @ weight.reshape(E, -1)).reshape(B, C_out, C_in_g, K)
    cb = r @ bias
    xp = jnp.pad(x, ((0, 0), (0, 0), (padding, padding)))
    W_out = (W + 2 * padding - dilation * (K - 1) - 1) // stride + 1
    cols = [xp[:, :, kk * dilation:
               kk * dilation + (W_out - 1) * stride + 1:stride]
            for kk in range(K)]
    xc = jnp.stack(cols, axis=2)                     # (B, C_in, K, W_out)
    return jnp.einsum('bock,bckt->bot', cw, xc) + cb[:, :, None]


if __name__ == "__main__":
    B, C_in, C_out, K, W, E = 2, 4, 8, 3, 16, 4
    stride, padding, dilation, groups = 1, 1, 1, 1

    key = jax.random.PRNGKey(0)
    kx, kw, kb, kfw, kfb = jax.random.split(key, 5)
    x = jax.random.normal(kx, (B, C_in, W), jnp.float32)

    # deterministic init mimicking the module's kaiming_uniform / linear init
    fan_in = (C_in // groups) * K
    bound = 1.0 / math.sqrt(fan_in)
    weight = jax.random.uniform(kw, (E, C_out, C_in // groups, K),
                                jnp.float32, -bound, bound)
    bias = jax.random.uniform(kb, (E, C_out), jnp.float32, -bound, bound)
    fc_bound = 1.0 / math.sqrt(C_in)
    fc_w = jax.random.uniform(kfw, (E, C_in), jnp.float32, -fc_bound, fc_bound)
    fc_b = jax.random.uniform(kfb, (E,), jnp.float32, -fc_bound, fc_bound)

    out = cond_conv1d(x, fc_w, fc_b, weight, bias, stride=stride,
                      padding=padding, dilation=dilation, groups=groups)
    out = jax.block_until_ready(out)

    ref = reference(x, fc_w, fc_b, weight, bias, stride, padding, dilation)
    assert out.shape == ref.shape == (B, C_out, W)
    assert jnp.allclose(out, ref, atol=2e-4, rtol=2e-4), \
        float(jnp.max(jnp.abs(out - ref)))
    print("KERNEL_OK")
</pallas_src>

<mosaic_0001>
module attributes {stable_mosaic.version = 11 : i64} {
  func.func @kernel(%arg0: i32, %arg1: memref<2x4x16xf32, #tpu.memory_space<vmem>>, %arg2: memref<4x4xf32, #tpu.memory_space<vmem>>, %arg3: memref<1x4xf32, #tpu.memory_space<vmem>>, %arg4: memref<4x104xf32, #tpu.memory_space<vmem>>, %arg5: memref<2x8x128xf32, #tpu.memory_space<vmem>>, %arg6: memref<2x4x256xf32, #tpu.memory_space<vmem>>, %arg7: memref<1x2x13x128xf32, #tpu.memory_space<vmem>>, %arg8: memref<2x8x13xf32, #tpu.memory_space<vmem>>) attributes {dimension_semantics = [#tpu.dimension_semantics<parallel>], iteration_bounds = array<i64: 1>, scalar_prefetch = 0 : i64, scratch_operands = 3 : i64, tpu.core_type = #tpu.core_type<tc>, window_params = [{transform_indices = @transform_0, window_bounds = array<i64: 2, 4, 16>}, {pipeline_mode = #tpu.pipeline_mode<synchronous>, transform_indices = @transform_1, window_bounds = array<i64: 4, 4>}, {pipeline_mode = #tpu.pipeline_mode<synchronous>, transform_indices = @transform_2, window_bounds = array<i64: 1, 4>}, {pipeline_mode = #tpu.pipeline_mode<synchronous>, transform_indices = @transform_3, window_bounds = array<i64: 4, 104>}, {transform_indices = @transform_4, window_bounds = array<i64: 2, 8, 128>}]} {
    %cst = arith.constant 0.000000e+00 : f32
    %0 = vector.broadcast %cst : f32 to vector<2x4x1xf32>
    %c0 = arith.constant 0 : index
    %c0_0 = arith.constant 0 : index
    %c0_1 = arith.constant 0 : index
    %1 = vector.load %arg6[%c0, %c0_0, %c0_1] : memref<2x4x256xf32, #tpu.memory_space<vmem>>, vector<2x4x1xf32>
    tpu.vector_store %arg6[%c0, %c0_0, %c0_1], %0 {strides = array<i32>} : memref<2x4x256xf32, #tpu.memory_space<vmem>>, vector<2x4x1xf32>,
    %cst_2 = arith.constant 0.000000e+00 : f32
    %2 = vector.broadcast %cst_2 : f32 to vector<2x4x239xf32>
    %c0_3 = arith.constant 0 : index
    %c0_4 = arith.constant 0 : index
    %c17 = arith.constant 17 : index
    %3 = vector.load %arg6[%c0_3, %c0_4, %c17] : memref<2x4x256xf32, #tpu.memory_space<vmem>>, vector<2x4x239xf32>
    tpu.vector_store %arg6[%c0_3, %c0_4, %c17], %2 {strides = array<i32>} : memref<2x4x256xf32, #tpu.memory_space<vmem>>, vector<2x4x239xf32>,
    %c0_5 = arith.constant 0 : index
    %c0_6 = arith.constant 0 : index
    %c0_7 = arith.constant 0 : index
    %4 = vector.load %arg1[%c0_5, %c0_6, %c0_7] : memref<2x4x16xf32, #tpu.memory_space<vmem>>, vector<2x4x16xf32>
    %c0_8 = arith.constant 0 : index
    %c0_9 = arith.constant 0 : index
    %c1 = arith.constant 1 : index
    %5 = vector.load %arg6[%c0_8, %c0_9, %c1] : memref<2x4x256xf32, #tpu.memory_space<vmem>>, vector<2x4x16xf32>
    tpu.vector_store %arg6[%c0_8, %c0_9, %c1], %4 {strides = array<i32>} : memref<2x4x256xf32, #tpu.memory_space<vmem>>, vector<2x4x16xf32>,
    %c0_10 = arith.constant 0 : index
    %c0_11 = arith.constant 0 : index
    %c0_12 = arith.constant 0 : index
    %6 = vector.load %arg1[%c0_10, %c0_11, %c0_12] : memref<2x4x16xf32, #tpu.memory_space<vmem>>, vector<2x4x16xf32>
    %cst_13 = arith.constant dense<0.000000e+00> : vector<2x4xf32>
    %7 = vector.multi_reduction <add>, %6, %cst_13 [2] : vector<2x4x16xf32> to vector<2x4xf32>
    %cst_14 = arith.constant 1.600000e+01 : f32
    %8 = vector.broadcast %cst_14 : f32 to vector<2x4xf32>
    %9 = arith.divf %7, %8 : vector<2x4xf32>
    %c0_15 = arith.constant 0 : index
    %c0_16 = arith.constant 0 : index
    %10 = vector.load %arg2[%c0_15, %c0_16] : memref<4x4xf32, #tpu.memory_space<vmem>>, vector<4x4xf32>
    %cst_17 = arith.constant dense<0.000000e+00> : vector<2x4xf32>
    %11 = tpu.matmul %9, %10, %cst_17 {dimension_numbers = #tpu.dot_dimension_numbers<[1], [0], [0], [1], [0, 0, 1, 1], [], []>} : vector<2x4xf32>, vector<4x4xf32>, vector<2x4xf32> -> vector<2x4xf32>
    %c0_18 = arith.constant 0 : index
    %c0_19 = arith.constant 0 : index
    %12 = vector.load %arg3[%c0_18, %c0_19] : memref<1x4xf32, #tpu.memory_space<vmem>>, vector<1x4xf32>
    %13 = vector.broadcast %12 : vector<1x4xf32> to vector<2x4xf32>
    %14 = arith.addf %11, %13 : vector<2x4xf32>
    %15 = arith.negf %14 : vector<2x4xf32>
    %16 = math.exp %15 : vector<2x4xf32>
    %cst_20 = arith.constant 1.000000e+00 : f32
    %17 = vector.broadcast %cst_20 : f32 to vector<2x4xf32>
    %18 = arith.addf %17, %16 : vector<2x4xf32>
    %19 = arith.divf %17, %18 : vector<2x4xf32>
    %c0_21 = arith.constant 0 : index
    %c0_22 = arith.constant 0 : index
    %20 = vector.load %arg4[%c0_21, %c0_22] : memref<4x104xf32, #tpu.memory_space<vmem>>, vector<4x104xf32>
    %cst_23 = arith.constant dense<0.000000e+00> : vector<2x104xf32>
    %21 = tpu.matmul %19, %20, %cst_23 {dimension_numbers = #tpu.dot_dimension_numbers<[1], [0], [0], [1], [0, 0, 1, 1], [], []>} : vector<2x4xf32>, vector<4x104xf32>, vector<2x104xf32> -> vector<2x104xf32>
    %22 = vector.extract_strided_slice %21 {offsets = [0, 0], sizes = [2, 13], strides = [1, 1]} : vector<2x104xf32> to vector<2x13xf32>
    %c0_24 = arith.constant 0 : index
    %c0_25 = arith.constant 0 : index
    %c0_26 = arith.constant 0 : index
    %23 = vector.load %arg8[%c0_24, %c0_25, %c0_26] : memref<2x8x13xf32, #tpu.memory_space<vmem>>, vector<2x1x13xf32>
    %24 = vector.shape_cast %23 : vector<2x1x13xf32> to vector<2x13xf32>
    %25 = vector.shape_cast %22 : vector<2x13xf32> to vector<2x1x13xf32>
    tpu.vector_store %arg8[%c0_24, %c0_25, %c0_26], %25 {strides = array<i32>} : memref<2x8x13xf32, #tpu.memory_space<vmem>>, vector<2x1x13xf32>,
    %26 = vector.extract_strided_slice %21 {offsets = [0, 13], sizes = [2, 13], strides = [1, 1]} : vector<2x104xf32> to vector<2x13xf32>
    %c0_27 = arith.constant 0 : index
    %c1_28 = arith.constant 1 : index
    %c0_29 = arith.constant 0 : index
    %27 = vector.load %arg8[%c0_27, %c1_28, %c0_29] : memref<2x8x13xf32, #tpu.memory_space<vmem>>, vector<2x1x13xf32>
    %28 = vector.shape_cast %27 : vector<2x1x13xf32> to vector<2x13xf32>
    %29 = vector.shape_cast %26 : vector<2x13xf32> to vector<2x1x13xf32>
    tpu.vector_store %arg8[%c0_27, %c1_28, %c0_29], %29 {strides = array<i32>} : memref<2x8x13xf32, #tpu.memory_space<vmem>>, vector<2x1x13xf32>,
    %30 = vector.extract_strided_slice %21 {offsets = [0, 26], sizes = [2, 13], strides = [1, 1]} : vector<2x104xf32> to vector<2x13xf32>
    %c0_30 = arith.constant 0 : index
    %c2 = arith.constant 2 : index
    %c0_31 = arith.constant 0 : index
    %31 = vector.load %arg8[%c0_30, %c2, %c0_31] : memref<2x8x13xf32, #tpu.memory_space<vmem>>, vector<2x1x13xf32>
    %32 = vector.shape_cast %31 : vector<2x1x13xf32> to vector<2x13xf32>
    %33 = vector.shape_cast %30 : vector<2x13xf32> to vector<2x1x13xf32>
    tpu.vector_store %arg8[%c0_30, %c2, %c0_31], %33 {strides = array<i32>} : memref<2x8x13xf32, #tpu.memory_space<vmem>>, vector<2x1x13xf32>,
    %34 = vector.extract_strided_slice %21 {offsets = [0, 39], sizes = [2, 13], strides = [1, 1]} : vector<2x104xf32> to vector<2x13xf32>
    %c0_32 = arith.constant 0 : index
    %c3 = arith.constant 3 : index
    %c0_33 = arith.constant 0 : index
    %35 = vector.load %arg8[%c0_32, %c3, %c0_33] : memref<2x8x13xf32, #tpu.memory_space<vmem>>, vector<2x1x13xf32>
    %36 = vector.shape_cast %35 : vector<2x1x13xf32> to vector<2x13xf32>
    %37 = vector.shape_cast %34 : vector<2x13xf32> to vector<2x1x13xf32>
    tpu.vector_store %arg8[%c0_32, %c3, %c0_33], %37 {strides = array<i32>} : memref<2x8x13xf32, #tpu.memory_space<vmem>>, vector<2x1x13xf32>,
    %38 = vector.extract_strided_slice %21 {offsets = [0, 52], sizes = [2, 13], strides = [1, 1]} : vector<2x104xf32> to vector<2x13xf32>
    %c0_34 = arith.constant 0 : index
    %c4 = arith.constant 4 : index
    %c0_35 = arith.constant 0 : index
    %39 = vector.load %arg8[%c0_34, %c4, %c0_35] : memref<2x8x13xf32, #tpu.memory_space<vmem>>, vector<2x1x13xf32>
    %40 = vector.shape_cast %39 : vector<2x1x13xf32> to vector<2x13xf32>
    %41 = vector.shape_cast %38 : vector<2x13xf32> to vector<2x1x13xf32>
    tpu.vector_store %arg8[%c0_34, %c4, %c0_35], %41 {strides = array<i32>} : memref<2x8x13xf32, #tpu.memory_space<vmem>>, vector<2x1x13xf32>,
    %42 = vector.extract_strided_slice %21 {offsets = [0, 65], sizes = [2, 13], strides = [1, 1]} : vector<2x104xf32> to vector<2x13xf32>
    %c0_36 = arith.constant 0 : index
    %c5 = arith.constant 5 : index
    %c0_37 = arith.constant 0 : index
    %43 = vector.load %arg8[%c0_36, %c5, %c0_37] : memref<2x8x13xf32, #tpu.memory_space<vmem>>, vector<2x1x13xf32>
    %44 = vector.shape_cast %43 : vector<2x1x13xf32> to vector<2x13xf32>
    %45 = vector.shape_cast %42 : vector<2x13xf32> to vector<2x1x13xf32>
    tpu.vector_store %arg8[%c0_36, %c5, %c0_37], %45 {strides = array<i32>} : memref<2x8x13xf32, #tpu.memory_space<vmem>>, vector<2x1x13xf32>,
    %46 = vector.extract_strided_slice %21 {offsets = [0, 78], sizes = [2, 13], strides = [1, 1]} : vector<2x104xf32> to vector<2x13xf32>
    %c0_38 = arith.constant 0 : index
    %c6 = arith.constant 6 : index
    %c0_39 = arith.constant 0 : index
    %47 = vector.load %arg8[%c0_38, %c6, %c0_39] : memref<2x8x13xf32, #tpu.memory_space<vmem>>, vector<2x1x13xf32>
    %48 = vector.shape_cast %47 : vector<2x1x13xf32> to vector<2x13xf32>
    %49 = vector.shape_cast %46 : vector<2x13xf32> to vector<2x1x13xf32>
    tpu.vector_store %arg8[%c0_38, %c6, %c0_39], %49 {strides = array<i32>} : memref<2x8x13xf32, #tpu.memory_space<vmem>>, vector<2x1x13xf32>,
    %50 = vector.extract_strided_slice %21 {offsets = [0, 91], sizes = [2, 13], strides = [1, 1]} : vector<2x104xf32> to vector<2x13xf32>
    %c0_40 = arith.constant 0 : index
    %c7 = arith.constant 7 : index
    %c0_41 = arith.constant 0 : index
    %51 = vector.load %arg8[%c0_40, %c7, %c0_41] : memref<2x8x13xf32, #tpu.memory_space<vmem>>, vector<2x1x13xf32>
    %52 = vector.shape_cast %51 : vector<2x1x13xf32> to vector<2x13xf32>
    %53 = vector.shape_cast %50 : vector<2x13xf32> to vector<2x1x13xf32>
    tpu.vector_store %arg8[%c0_40, %c7, %c0_41], %53 {strides = array<i32>} : memref<2x8x13xf32, #tpu.memory_space<vmem>>, vector<2x1x13xf32>,
    %cst_42 = arith.constant 1.000000e+00 : f32
    %54 = vector.broadcast %cst_42 : f32 to vector<2x128xf32>
    %c0_43 = arith.constant 0 : index
    %c0_44 = arith.constant 0 : index
    %c0_45 = arith.constant 0 : index
    %55 = vector.load %arg6[%c0_43, %c0_44, %c0_45] : memref<2x4x256xf32, #tpu.memory_space<vmem>>, vector<2x4x128xf32>
    %c0_46 = arith.constant 0 : index
    %c0_47 = arith.constant 0 : index
    %c0_48 = arith.constant 0 : index
    %c0_49 = arith.constant 0 : index
    %56 = vector.load %arg7[%c0_46, %c0_47, %c0_48, %c0_49] : memref<1x2x13x128xf32, #tpu.memory_space<vmem>>, vector<1x2x4x128xf32>
    %57 = vector.shape_cast %56 : vector<1x2x4x128xf32> to vector<2x4x128xf32>
    %58 = vector.shape_cast %55 : vector<2x4x128xf32> to vector<1x2x4x128xf32>
    tpu.vector_store %arg7[%c0_46, %c0_47, %c0_48, %c0_49], %58 {strides = array<i32>} : memref<1x2x13x128xf32, #tpu.memory_space<vmem>>, vector<1x2x4x128xf32>,
    %c0_50 = arith.constant 0 : index
    %c0_51 = arith.constant 0 : index
    %c1_52 = arith.constant 1 : index
    %59 = vector.load %arg6[%c0_50, %c0_51, %c1_52] : memref<2x4x256xf32, #tpu.memory_space<vmem>>, vector<2x4x128xf32>
    %c0_53 = arith.constant 0 : index
    %c0_54 = arith.constant 0 : index
    %c4_55 = arith.constant 4 : index
    %c0_56 = arith.constant 0 : index
    %60 = vector.load %arg7[%c0_53, %c0_54, %c4_55, %c0_56] : memref<1x2x13x128xf32, #tpu.memory_space<vmem>>, vector<1x2x4x128xf32>
    %61 = vector.shape_cast %60 : vector<1x2x4x128xf32> to vector<2x4x128xf32>
    %62 = vector.shape_cast %59 : vector<2x4x128xf32> to vector<1x2x4x128xf32>
    tpu.vector_store %arg7[%c0_53, %c0_54, %c4_55, %c0_56], %62 {strides = array<i32>} : memref<1x2x13x128xf32, #tpu.memory_space<vmem>>, vector<1x2x4x128xf32>,
    %c0_57 = arith.constant 0 : index
    %c0_58 = arith.constant 0 : index
    %c2_59 = arith.constant 2 : index
    %63 = vector.load %arg6[%c0_57, %c0_58, %c2_59] : memref<2x4x256xf32, #tpu.memory_space<vmem>>, vector<2x4x128xf32>
    %c0_60 = arith.constant 0 : index
    %c0_61 = arith.constant 0 : index
    %c8 = arith.constant 8 : index
    %c0_62 = arith.constant 0 : index
    %64 = vector.load %arg7[%c0_60, %c0_61, %c8, %c0_62] : memref<1x2x13x128xf32, #tpu.memory_space<vmem>>, vector<1x2x4x128xf32>
    %65 = vector.shape_cast %64 : vector<1x2x4x128xf32> to vector<2x4x128xf32>
    %66 = vector.shape_cast %63 : vector<2x4x128xf32> to vector<1x2x4x128xf32>
    tpu.vector_store %arg7[%c0_60, %c0_61, %c8, %c0_62], %66 {strides = array<i32>} : memref<1x2x13x128xf32, #tpu.memory_space<vmem>>, vector<1x2x4x128xf32>,
    %c0_63 = arith.constant 0 : index
    %c0_64 = arith.constant 0 : index
    %c12 = arith.constant 12 : index
    %c0_65 = arith.constant 0 : index
    %67 = vector.load %arg7[%c0_63, %c0_64, %c12, %c0_65] : memref<1x2x13x128xf32, #tpu.memory_space<vmem>>, vector<1x2x1x128xf32>
    %68 = vector.shape_cast %67 : vector<1x2x1x128xf32> to vector<2x128xf32>
    %69 = vector.shape_cast %54 : vector<2x128xf32> to vector<1x2x1x128xf32>
    tpu.vector_store %arg7[%c0_63, %c0_64, %c12, %c0_65], %69 {strides = array<i32>} : memref<1x2x13x128xf32, #tpu.memory_space<vmem>>, vector<1x2x1x128xf32>,
    %c0_66 = arith.constant 0 : index
    %c0_67 = arith.constant 0 : index
    %c0_68 = arith.constant 0 : index
    %70 = vector.load %arg8[%c0_66, %c0_67, %c0_68] : memref<2x8x13xf32, #tpu.memory_space<vmem>>, vector<2x8x13xf32>
    %c0_69 = arith.constant 0 : index
    %c0_70 = arith.constant 0 : index
    %c0_71 = arith.constant 0 : index
    %c0_72 = arith.constant 0 : index
    %71 = vector.load %arg7[%c0_69, %c0_70, %c0_71, %c0_72] : memref<1x2x13x128xf32, #tpu.memory_space<vmem>>, vector<1x2x13x128xf32>
    %72 = vector.shape_cast %71 : vector<1x2x13x128xf32> to vector<2x13x128xf32>
    "tpu.trace_start"() <{level = 10 : i32, message = "boj,bjw->bow"}> : () -> ()
    %cst_73 = arith.constant dense<0.000000e+00> : vector<2x8x128xf32>
    %73 = tpu.matmul %70, %72, %cst_73 {dimension_numbers = #tpu.dot_dimension_numbers<[2], [1], [1], [2], [0, 0, 0, 1, 1, 2], [0], [0]>} : vector<2x8x13xf32>, vector<2x13x128xf32>, vector<2x8x128xf32> -> vector<2x8x128xf32>
    "tpu.trace_stop"() : () -> ()
    %c0_74 = arith.constant 0 : index
    %c0_75 = arith.constant 0 : index
    %c0_76 = arith.constant 0 : index
    %74 = vector.load %arg5[%c0_74, %c0_75, %c0_76] : memref<2x8x128xf32, #tpu.memory_space<vmem>>, vector<2x8x128xf32>
    tpu.vector_store %arg5[%c0_74, %c0_75, %c0_76], %73 {strides = array<i32>} : memref<2x8x128xf32, #tpu.memory_space<vmem>>, vector<2x8x128xf32>,
    return
  }
  func.func @transform_0(%arg0: i32) -> (i32, i32, i32) {
    %c0_i32 = arith.constant 0 : i32
    %c0_i32_0 = arith.constant 0 : i32
    %c0_i32_1 = arith.constant 0 : i32
    return %arg0, %c0_i32, %c0_i32_0 : i32, i32, i32
  }
  func.func @transform_1(%arg0: i32) -> (i32, i32) {
    %c0_i32 = arith.constant 0 : i32
    %c0_i32_0 = arith.constant 0 : i32
    %c0_i32_1 = arith.constant 0 : i32
    return %c0_i32, %c0_i32_0 : i32, i32
  }
  func.func @transform_2(%arg0: i32) -> (i32, i32) {
    %c0_i32 = arith.constant 0 : i32
    %c0_i32_0 = arith.constant 0 : i32
    %c0_i32_1 = arith.constant 0 : i32
    return %c0_i32, %c0_i32_0 : i32, i32
  }
  func.func @transform_3(%arg0: i32) -> (i32, i32) {
    %c0_i32 = arith.constant 0 : i32
    %c0_i32_0 = arith.constant 0 : i32
    %c0_i32_1 = arith.constant 0 : i32
    return %c0_i32, %c0_i32_0 : i32, i32
  }
  func.func @transform_4(%arg0: i32) -> (i32, i32, i32) {
    %c0_i32 = arith.constant 0 : i32
    %c0_i32_0 = arith.constant 0 : i32
    %c0_i32_1 = arith.constant 0 : i32
    return %arg0, %c0_i32, %c0_i32_0 : i32, i32, i32
  }
}

</mosaic_0001>

<llo_original>
// kernel: tpu_custom_call.1
$region0: #{tpu_custom_call.1}
  #allocation0 [shape = 'u32[]', space=smem, size = 0x4, offset = 0x4, fixed_abs, tag = 'smem constant byte address 0x4 - core index']
  #allocation1 [shape = 'u32[144,128]{1,0:T(1,128)}', space=vmem, size = 0x12000, scoped, tag = 'internal scratch']
  #allocation2 [shape = 'f32[2,4,256]{2,1,0:T(4,128)}', space=vmem, size = 0x2000, scoped, tag = 'scratch operand']
  #allocation3 [shape = 'f32[1,2,13,128]{3,2,1,0:T(8,128)}', space=vmem, size = 0x4000, scoped, tag = 'scratch operand']
  #allocation4 [shape = 'f32[2,8,13]{2,1,0:T(8,128)}', space=vmem, size = 0x2000, scoped, tag = 'scratch operand']
  %s0 = inlined_call_operand.hbm [shape: f32[2,4,16], index: 0, kind: input, shape index: {}]
  %s1 = inlined_call_operand.hbm [shape: f32[4,4], index: 1, kind: input, shape index: {}]
  %s2 = inlined_call_operand.vmem [shape: f32[1,4], index: 2, kind: input, shape index: {}]
  %s3 = inlined_call_operand.vmem [shape: f32[4,104], index: 3, kind: input, shape index: {}]
  %s4 = inlined_call_operand.hbm [shape: f32[2,8,128], index: 4, kind: output, shape index: {}]
  %s5 = sld [smem:[#allocation0]]
  $region34: #{tpu_custom_call.1} parent=0
    _
  %s7 = ssub.s32 1, %s5
  %s8 = scalar_select 0, %s7, %s5
  $region1: #{tpu_custom_call.1} parent=0
    #allocation5 [shape = 'u8[4096]{0}', space=vmem, size = 0x1000, scoped, tag = 'input window, operand 0, single buffered']
    #allocation6 [shape = 's32[1]{0}', space=sflag, size = 0x4, scoped, tag = 'scoped memory for tpu_custom_call.1']
    #allocation7 [shape = 's32[1]{0}', space=sflag, size = 0x4, scoped, tag = 'scoped memory for tpu_custom_call.1']
    #allocation8 [shape = 'u8[2048]{0}', space=vmem, size = 0x800, scoped, tag = 'input window, operand 1, single buffered']
    #allocation9 [shape = 's32[1]{0}', space=sflag, size = 0x4, scoped, tag = 'scoped memory for tpu_custom_call.1']
    #allocation10 [shape = 'u8[8192]{0}', space=vmem, size = 0x2000, scoped, tag = 'output window, operand 0, single buffered']
    %9 = vsyncpa [#allocation6], 0
    %10 = vsyncpa [#allocation9], 0
    %11 = vsyncpa [#allocation7], 0
    // Predicated region
    $region2: #{tpu_custom_call.1} parent=1 // pred_check
      _
    $region3: #{tpu_custom_call.1} parent=1 // pred_check_branch
      %13 = sbr.rel (0) target = $region5
    $region4: #{tpu_custom_call.1} parent=1 // pred_region
      %s15 = ssub.s32 128, 128
      %16 = vsyncadd [#allocation6], %s15
      %s17 = sshll.u32 [#allocation5], 4
      %s18 = int_to_ptr.vmem [resolvable:$true] %s17
      %23 = dma.hbm_to_vmem [thread:$0]  %s0, 128, %s18, [#allocation6], 64, 64, 4
    $region5: #{tpu_custom_call.1} parent=1 // pred_fallthru
      _
    // Predicated region
    $region6: #{tpu_custom_call.1} parent=1 // pred_check
      _
    $region7: #{tpu_custom_call.1} parent=1 // pred_check_branch
      %25 = sbr.rel (0) target = $region9
    $region8: #{tpu_custom_call.1} parent=1 // pred_region
      %s27 = ssub.s32 64, 64
      %28 = vsyncadd [#allocation9], %s27
      %s30 = sshll.u32 [#allocation8], 4
      %s31 = int_to_ptr.vmem [resolvable:$true] %s30
      %33 = dma.hbm_to_vmem [thread:$0]  %s1, 64, %s31, [#allocation9]
    $region9: #{tpu_custom_call.1} parent=1 // pred_fallthru
      _
    // Predicated region
    $region10: #{tpu_custom_call.1} parent=1 // pred_check
      _
    $region11: #{tpu_custom_call.1} parent=1 // pred_check_branch
      %35 = sbr.rel (0) target = $region13
    $region12: #{tpu_custom_call.1} parent=1 // pred_region
      _
    $region13: #{tpu_custom_call.1} parent=1 // pred_fallthru
      _
    // Predicated region
    $region14: #{tpu_custom_call.1} parent=1 // pred_check
      _
    $region15: #{tpu_custom_call.1} parent=1 // pred_check_branch
      %37 = sbr.rel (0) target = $region17
    $region16: #{tpu_custom_call.1} parent=1 // pred_region
      _
    $region17: #{tpu_custom_call.1} parent=1 // pred_fallthru
      _
    // Predicated region
    $region18: #{tpu_custom_call.1} parent=1 // pred_check
      _
    $region19: #{tpu_custom_call.1} parent=1 // pred_check_branch
      %39 = sbr.rel (0) target = $region21
    $region20: #{tpu_custom_call.1} parent=1 // pred_region
      %40 = dma.done [#allocation6], 128
    $region21: #{tpu_custom_call.1} parent=1 // pred_fallthru
      _
    // Predicated region
    $region22: #{tpu_custom_call.1} parent=1 // pred_check
      _
    $region23: #{tpu_custom_call.1} parent=1 // pred_check_branch
      %42 = sbr.rel (0) target = $region25
    $region24: #{tpu_custom_call.1} parent=1 // pred_region
      %43 = dma.done [#allocation9], 64
    $region25: #{tpu_custom_call.1} parent=1 // pred_fallthru
      _
    %vm44 = vcmask 3072
    %45 = vst.msk [vmem:[#allocation2] sm:$0xf] %vm44, 0.0
    %46 = vst.msk [vmem:[#allocation2 + $0x8] sm:$0xf] %vm44, 0.0
    %vm47 = vcmask 1043592
    %vm48 = vcmask 1047556
    %vm49 = vmor %vm48, %vm47
    %50 = vst.msk [vmem:[#allocation2] sm:$0xff] %vm49, 0.0
    %51 = vst.msk [vmem:[#allocation2 + $0x8] sm:$0xff] %vm49, 0.0
    %v52 = vld [vmem:[#allocation5] sm:$0xf]
    %v53 = vld [vmem:[#allocation5 + $0x4] sm:$0xf]
    %56 = vrot.lane.b32.xlu0 %v52, 1
    %v57 = vpop.permute.xlu0 %56
    %58 = vrot.lane.b32.xlu0 %v53, 1
    %v59 = vpop.permute.xlu0 %58
    %vm62 = vcmask 134152
    %63 = vst.msk [vmem:[#allocation2] sm:$0xf] %vm62, %v57
    %64 = vst.msk [vmem:[#allocation2 + $0x8] sm:$0xf] %vm62, %v59
    %v65 = vld [vmem:[#allocation5] sm:$0xf]
    %v66 = vld [vmem:[#allocation5 + $0x4] sm:$0xf]
    %vm67 = vcmask 125952
    %v68 = vsel %vm67, %v65, 0.0
    %69 = vadd.xlane.f32.xlu0 %v68
    %v70 = vpop.xlane.xlu0 %69
    %v71 = vsel %vm67, %v66, 0.0
    %72 = vadd.xlane.f32.xlu0 %v71
    %v73 = vpop.xlane.xlu0 %72
    %v74 = vrcp.pop 16.0
    %v75 = vmul.f32 %v70, %v74
    %v76 = vmul.f32 %v73, %v74
    %v77 = vld [vmem:[#allocation8] sm:$0xf]
    %v78 = vld [vmem:[%s2] sm:$0x1]
    %v80 = vlaneseq
    %v81 = vshrl.u32 %v80, 7
    %v82 = vsub.s32 0, %v81
    %v83 = vrot.slane %v78, %v82
    %v87 = vlaneseq
    %v88 = vand.u32 %v87, 127
    %v89 = vlaneseq
    %v90 = vshrl.u32 %v89, 7
    %v91 = vsub.s32 %v88, %v90
    %v92 = vrot.slane %v75, %v91
    %v93 = vlaneseq
    %v94 = vshrl.u32 %v93, 7
    %v95 = vsub.s32 %v88, %v94
    %v96 = vrot.slane %v76, %v95
    %vm97 = vcmask 1041409
    %v98 = vsel %vm97, %v96, %v92
    %vm99 = vcmask 31744
    %v100 = vsel %vm99, %v98, 0
    %vm102 = vcmask 1043456
    %v104 = vsel %vm102, %v77, 0
    %106 = vmatprep.subr.mxu0 0.0
    %107 = vmatpush1.msra.mxu0 %v104
    %108 = vmatprep.subr.mxu0 0.0
    %109 = vmatpush1.msra.mxu0 0.0
    %110 = vmatprep.subr.mxu0 0.0
    %111 = vmatpush1.msra.mxu0 0.0
    %112 = vmatprep.subr.mxu0 0.0
    %113 = vmatpush1.msra.mxu0 0.0
    %114 = vmatprep.subr.mxu0 0.0
    %115 = vmatpush1.msra.mxu0 0.0
    %116 = vmatprep.subr.mxu0 0.0
    %117 = vmatpush1.msra.mxu0 0.0
    %118 = vmatprep.subr.mxu0 0.0
    %119 = vmatpush1.msra.mxu0 0.0
    %120 = vmatprep.subr.mxu0 0.0
    %121 = vmatpush1.msra.mxu0 0.0
    %122 = vmatprep.subr.mxu0 0.0
    %123 = vmatpush1.msra.mxu0 0.0
    %124 = vmatprep.subr.mxu0 0.0
    %125 = vmatpush1.msra.mxu0 0.0
    %126 = vmatprep.subr.mxu0 0.0
    %127 = vmatpush1.msra.mxu0 0.0
    %128 = vmatprep.subr.mxu0 0.0
    %129 = vmatpush1.msra.mxu0 0.0
    %130 = vmatprep.subr.mxu0 0.0
    %131 = vmatpush1.msra.mxu0 0.0
    %132 = vmatprep.subr.mxu0 0.0
    %133 = vmatpush1.msra.mxu0 0.0
    %134 = vmatprep.subr.mxu0 0.0
    %135 = vmatpush1.msra.mxu0 0.0
    %136 = vmatprep.subr.mxu0 0.0
    %137 = vmatpush1.msra.mxu0 0.0
    %138 = vmatprep.subr.mxu0 0.0
    %139 = vmatpush1.msra.mxu0 0.0
    %140 = vmatprep.subr.mxu0 0.0
    %141 = vmatpush1.msra.mxu0 0.0
    %142 = vmatprep.subr.mxu0 0.0
    %143 = vmatpush1.msra.mxu0 0.0
    %144 = vmatprep.subr.mxu0 0.0
    %145 = vmatpush1.msra.mxu0 0.0
    %146 = vmatprep.subr.mxu0 0.0
    %147 = vmatpush1.msra.mxu0 0.0
    %148 = vmatprep.subr.mxu0 0.0
    %149 = vmatpush1.msra.mxu0 0.0
    %150 = vmatprep.subr.mxu0 0.0
    %151 = vmatpush1.msra.mxu0 0.0
    %152 = vmatprep.subr.mxu0 0.0
    %153 = vmatpush1.msra.mxu0 0.0
    %154 = vmatprep.subr.mxu0 0.0
    %155 = vmatpush1.msra.mxu0 0.0
    %156 = vmatprep.subr.mxu0 0.0
    %157 = vmatpush1.msra.mxu0 0.0
    %158 = vmatprep.subr.mxu0 0.0
    %159 = vmatpush1.msra.mxu0 0.0
    %160 = vmatprep.subr.mxu0 0.0
    %161 = vmatpush1.msra.mxu0 0.0
    %162 = vmatprep.subr.mxu0 0.0
    %163 = vmatpush1.msra.mxu0 0.0
    %164 = vmatprep.subr.mxu0 0.0
    %165 = vmatpush1.msra.mxu0 0.0
    %166 = vmatprep.subr.mxu0 0.0
    %167 = vmatpush1.msra.mxu0 0.0
    %168 = vmatprep.subr.mxu0 0.0
    %169 = vmatpush1.msra.mxu0 0.0
    %170 = vmatprep.mubr.f32.mxu0 0.0
    %171 = vmatmul.mubr.f32.gmra.mrb[0].mxu0 %v100
    %v172 = vpop.f32.mrb[0].mxu0
    %v173 = vadd.f32 %v83, %v172
    %v174 = vpop.f32.mrb[0].mxu0
    %175 = vdwg.mxu0
    %v176 = vxor.u32 %v173, 2147483648
    %v177 = vmul.f32 %v176, 1.442695
    %v178 = vpow.pop %v177
    %v179 = vadd.f32 %v178, 1.0
    %v180 = vrcp.pop %v179
    %v181 = vmul.f32 1.0, %v180
    %v182 = vld [vmem:[%s3] sm:$0xf]
    %v184 = vsel %vm99, %v181, 0
    %v187 = vsel %vm102, %v182, 0
    %189 = vmatprep.subr.mxu0 0.0
    %190 = vmatpush1.msra.mxu0 %v187
    %191 = vmatprep.subr.mxu0 0.0
    %192 = vmatpush1.msra.mxu0 0.0
    %193 = vmatprep.subr.mxu0 0.0
    %194 = vmatpush1.msra.mxu0 0.0
    %195 = vmatprep.subr.mxu0 0.0
    %196 = vmatpush1.msra.mxu0 0.0
    %197 = vmatprep.subr.mxu0 0.0
    %198 = vmatpush1.msra.mxu0 0.0
    %199 = vmatprep.subr.mxu0 0.0
    %200 = vmatpush1.msra.mxu0 0.0
    %201 = vmatprep.subr.mxu0 0.0
    %202 = vmatpush1.msra.mxu0 0.0
    %203 = vmatprep.subr.mxu0 0.0
    %204 = vmatpush1.msra.mxu0 0.0
    %205 = vmatprep.subr.mxu0 0.0
    %206 = vmatpush1.msra.mxu0 0.0
    %207 = vmatprep.subr.mxu0 0.0
    %208 = vmatpush1.msra.mxu0 0.0
    %209 = vmatprep.subr.mxu0 0.0
    %210 = vmatpush1.msra.mxu0 0.0
    %211 = vmatprep.subr.mxu0 0.0
    %212 = vmatpush1.msra.mxu0 0.0
    %213 = vmatprep.subr.mxu0 0.0
    %214 = vmatpush1.msra.mxu0 0.0
    %215 = vmatprep.subr.mxu0 0.0
    %216 = vmatpush1.msra.mxu0 0.0
    %217 = vmatprep.subr.mxu0 0.0
    %218 = vmatpush1.msra.mxu0 0.0
    %219 = vmatprep.subr.mxu0 0.0
    %220 = vmatpush1.msra.mxu0 0.0
    %221 = vmatprep.subr.mxu0 0.0
    %222 = vmatpush1.msra.mxu0 0.0
    %223 = vmatprep.subr.mxu0 0.0
    %224 = vmatpush1.msra.mxu0 0.0
    %225 = vmatprep.subr.mxu0 0.0
    %226 = vmatpush1.msra.mxu0 0.0
    %227 = vmatprep.subr.mxu0 0.0
    %228 = vmatpush1.msra.mxu0 0.0
    %229 = vmatprep.subr.mxu0 0.0
    %230 = vmatpush1.msra.mxu0 0.0
    %231 = vmatprep.subr.mxu0 0.0
    %232 = vmatpush1.msra.mxu0 0.0
    %233 = vmatprep.subr.mxu0 0.0
    %234 = vmatpush1.msra.mxu0 0.0
    %235 = vmatprep.subr.mxu0 0.0
    %236 = vmatpush1.msra.mxu0 0.0
    %237 = vmatprep.subr.mxu0 0.0
    %238 = vmatpush1.msra.mxu0 0.0
    %239 = vmatprep.subr.mxu0 0.0
    %240 = vmatpush1.msra.mxu0 0.0
    %241 = vmatprep.subr.mxu0 0.0
    %242 = vmatpush1.msra.mxu0 0.0
    %243 = vmatprep.subr.mxu0 0.0
    %244 = vmatpush1.msra.mxu0 0.0
    %245 = vmatprep.subr.mxu0 0.0
    %246 = vmatpush1.msra.mxu0 0.0
    %247 = vmatprep.subr.mxu0 0.0
    %248 = vmatpush1.msra.mxu0 0.0
    %249 = vmatprep.subr.mxu0 0.0
    %250 = vmatpush1.msra.mxu0 0.0
    %251 = vmatprep.subr.mxu0 0.0
    %252 = vmatpush1.msra.mxu0 0.0
    %253 = vmatprep.mubr.f32.mxu0 0.0
    %254 = vmatmul.mubr.f32.gmra.mrb[0].mxu0 %v184
    %v255 = vpop.f32.mrb[0].mxu0
    %v256 = vadd.f32 0.0, %v255
    %v257 = vpop.f32.mrb[0].mxu0
    %258 = vdwg.mxu0
    %v261 = vunpack.c.l.s4 1966171168
    %v262 = vunpack.c.0.s8 %v261
    %v263 = vlaneseq
    %v264 = vshrl.u32 %v263, 7
    %v265 = vsub.s32 %v262, %v264
    %v266 = vrot.slane %v256, %v265
    %v267 = vcombine.high %v266, %v266
    %v269 = vunpack.c.l.s4 1966171168
    %v270 = vunpack.c.0.s8 %v269
    %v271 = vlaneseq
    %v272 = vshrl.u32 %v271, 7
    %v273 = vsub.s32 %v270, %v272
    %v274 = vrot.slane %v266, %v273
    %v276 = vunpack.c.l.s4 1966171168
    %v277 = vunpack.c.0.s8 %v276
    %v278 = vlaneseq
    %v279 = vshrl.u32 %v278, 7
    %v280 = vsub.s32 %v277, %v279
    %v281 = vrot.slane %v267, %v280
    %vm284 = vcmask 98304
    %285 = vst.msk [vmem:[#allocation4] sm:$0x1] %vm284, %v274
    %286 = vst.msk [vmem:[#allocation4 + $0x8] sm:$0x1] %vm284, %v281
    %v287 = vlaneseq
    %v288 = vshrl.u32 %v287, 7
    %v289 = vsub.s32 0, %v288
    %v290 = vrot.slane %v274, %v289
    %v291 = vlaneseq
    %v292 = vshrl.u32 %v291, 7
    %v293 = vsub.s32 0, %v292
    %v294 = vrot.slane %v281, %v293
    %295 = vrot.lane.b32.xlu0 %v290, 115
    %v296 = vpop.permute.xlu0 %295
    %297 = vrot.lane.b32.xlu0 %v294, 115
    %v298 = vpop.permute.xlu0 %297
    %301 = vst.msk [vmem:[#allocation4 + $0x1] sm:$0x1] %vm284, %v296
    %302 = vst.msk [vmem:[#allocation4 + $0x9] sm:$0x1] %vm284, %v298
    %303 = vrot.lane.b32.xlu0 %v290, 102
    %v304 = vpop.permute.xlu0 %303
    %305 = vrot.lane.b32.xlu0 %v294, 102
    %v306 = vpop.permute.xlu0 %305
    %309 = vst.msk [vmem:[#allocation4 + $0x2] sm:$0x1] %vm284, %v304
    %310 = vst.msk [vmem:[#allocation4 + $0xa] sm:$0x1] %vm284, %v306
    %311 = vrot.lane.b32.xlu0 %v290, 89
    %v312 = vpop.permute.xlu0 %311
    %313 = vrot.lane.b32.xlu0 %v294, 89
    %v314 = vpop.permute.xlu0 %313
    %317 = vst.msk [vmem:[#allocation4 + $0x3] sm:$0x1] %vm284, %v312
    %318 = vst.msk [vmem:[#allocation4 + $0xb] sm:$0x1] %vm284, %v314
    %319 = vrot.lane.b32.xlu0 %v290, 76
    %v320 = vpop.permute.xlu0 %319
    %321 = vrot.lane.b32.xlu0 %v294, 76
    %v322 = vpop.permute.xlu0 %321
    %325 = vst.msk [vmem:[#allocation4 + $0x4] sm:$0x1] %vm284, %v320
    %326 = vst.msk [vmem:[#allocation4 + $0xc] sm:$0x1] %vm284, %v322
    %327 = vrot.lane.b32.xlu0 %v290, 63
    %v328 = vpop.permute.xlu0 %327
    %329 = vrot.lane.b32.xlu0 %v294, 63
    %v330 = vpop.permute.xlu0 %329
    %333 = vst.msk [vmem:[#allocation4 + $0x5] sm:$0x1] %vm284, %v328
    %334 = vst.msk [vmem:[#allocation4 + $0xd] sm:$0x1] %vm284, %v330
    %335 = vrot.lane.b32.xlu0 %v290, 50
    %v336 = vpop.permute.xlu0 %335
    %337 = vrot.lane.b32.xlu0 %v294, 50
    %v338 = vpop.permute.xlu0 %337
    %341 = vst.msk [vmem:[#allocation4 + $0x6] sm:$0x1] %vm284, %v336
    %342 = vst.msk [vmem:[#allocation4 + $0xe] sm:$0x1] %vm284, %v338
    %343 = vrot.lane.b32.xlu0 %v290, 37
    %v344 = vpop.permute.xlu0 %343
    %345 = vrot.lane.b32.xlu0 %v294, 37
    %v346 = vpop.permute.xlu0 %345
    %349 = vst.msk [vmem:[#allocation4 + $0x7] sm:$0x1] %vm284, %v344
    %350 = vst.msk [vmem:[#allocation4 + $0xf] sm:$0x1] %vm284, %v346
    %v351 = vld [vmem:[#allocation2] sm:$0xf]
    %v352 = vld [vmem:[#allocation2 + $0x8] sm:$0xf]
    %353 = vst [vmem:[#allocation3] sm:$0xf] %v351
    %354 = vst [vmem:[#allocation3 + $0x10] sm:$0xf] %v352
    %v355 = vld [vmem:[#allocation2] sm:$0xff]
    %v356 = vld [vmem:[#allocation2 + $0x8] sm:$0xff]
    %v359 = vcombine.high %v355, %v355
    %v360 = vcombine.high %v356, %v356
    %361 = vrot.lane.b32.xlu0 %v355, 127
    %v362 = vpop.permute.xlu0 %361
    %363 = vrot.lane.b32.xlu0 %v359, 127
    %v364 = vpop.permute.xlu0 %363
    %365 = vrot.lane.b32.xlu0 %v356, 127
    %v366 = vpop.permute.xlu0 %365
    %367 = vrot.lane.b32.xlu0 %v360, 127
    %v368 = vpop.permute.xlu0 %367
    %vm369 = vcmask 1039360
    %v370 = vsel %vm369, %v362, %v364
    %v371 = vsel %vm369, %v366, %v368
    %374 = vst [vmem:[#allocation3 + $0x4] sm:$0xf] %v370
    %375 = vst [vmem:[#allocation3 + $0x14] sm:$0xf] %v371
    %v376 = vld [vmem:[#allocation2] sm:$0xff]
    %v377 = vld [vmem:[#allocation2 + $0x8] sm:$0xff]
    %v380 = vcombine.high %v376, %v376
    %v381 = vcombine.high %v377, %v377
    %382 = vrot.lane.b32.xlu0 %v376, 126
    %v383 = vpop.permute.xlu0 %382
    %384 = vrot.lane.b32.xlu0 %v380, 126
    %v385 = vpop.permute.xlu0 %384
    %386 = vrot.lane.b32.xlu0 %v377, 126
    %v387 = vpop.permute.xlu0 %386
    %388 = vrot.lane.b32.xlu0 %v381, 126
    %v389 = vpop.permute.xlu0 %388
    %vm390 = vcmask 1031168
    %v391 = vsel %vm390, %v383, %v385
    %v392 = vsel %vm390, %v387, %v389
    %395 = vst [vmem:[#allocation3 + $0x8] sm:$0xf] %v391
    %396 = vst [vmem:[#allocation3 + $0x18] sm:$0xf] %v392
    %397 = vst [vmem:[#allocation3 + $0xc] sm:$0x1] 1.0
    %398 = vst [vmem:[#allocation3 + $0x1c] sm:$0x1] 1.0
    %v399 = vld [vmem:[#allocation4] sm:$0xff]
    %v400 = vld [vmem:[#allocation4 + $0x8] sm:$0xff]
    %v401 = vld [vmem:[#allocation3] sm:$0xff]
    %v402 = vld [vmem:[#allocation3 + $0x8] sm:$0x1f]
    %v403 = vld [vmem:[#allocation3 + $0x10] sm:$0xff]
    %v404 = vld [vmem:[#allocation3 + $0x18] sm:$0x1f]
    %vm405 = vcmask 105472
    %v407 = vsel %vm405, %v399, 0
    %vm409 = vcmask 1044480
    %v411 = vsel %vm409, %v402, 0
    %413 = vmatprep.subr.mxu0 0.0
    %414 = vmatpush1.msra.mxu0 %v401
    %415 = vmatprep.subr.mxu0 0.0
    %416 = vmatpush1.msra.mxu0 %v411
    %417 = vmatprep.subr.mxu0 0.0
    %418 = vmatpush1.msra.mxu0 0.0
    %419 = vmatprep.subr.mxu0 0.0
    %420 = vmatpush1.msra.mxu0 0.0
    %421 = vmatprep.subr.mxu0 0.0
    %422 = vmatpush1.msra.mxu0 0.0
    %423 = vmatprep.subr.mxu0 0.0
    %424 = vmatpush1.msra.mxu0 0.0
    %425 = vmatprep.subr.mxu0 0.0
    %426 = vmatpush1.msra.mxu0 0.0
    %427 = vmatprep.subr.mxu0 0.0
    %428 = vmatpush1.msra.mxu0 0.0
    %429 = vmatprep.subr.mxu0 0.0
    %430 = vmatpush1.msra.mxu0 0.0
    %431 = vmatprep.subr.mxu0 0.0
    %432 = vmatpush1.msra.mxu0 0.0
    %433 = vmatprep.subr.mxu0 0.0
    %434 = vmatpush1.msra.mxu0 0.0
    %435 = vmatprep.subr.mxu0 0.0
    %436 = vmatpush1.msra.mxu0 0.0
    %437 = vmatprep.subr.mxu0 0.0
    %438 = vmatpush1.msra.mxu0 0.0
    %439 = vmatprep.subr.mxu0 0.0
    %440 = vmatpush1.msra.mxu0 0.0
    %441 = vmatprep.subr.mxu0 0.0
    %442 = vmatpush1.msra.mxu0 0.0
    %443 = vmatprep.subr.mxu0 0.0
    %444 = vmatpush1.msra.mxu0 0.0
    %445 = vmatprep.subr.mxu0 0.0
    %446 = vmatpush1.msra.mxu0 0.0
    %447 = vmatprep.subr.mxu0 0.0
    %448 = vmatpush1.msra.mxu0 0.0
    %449 = vmatprep.subr.mxu0 0.0
    %450 = vmatpush1.msra.mxu0 0.0
    %451 = vmatprep.subr.mxu0 0.0
    %452 = vmatpush1.msra.mxu0 0.0
    %453 = vmatprep.subr.mxu0 0.0
    %454 = vmatpush1.msra.mxu0 0.0
    %455 = vmatprep.subr.mxu0 0.0
    %456 = vmatpush1.msra.mxu0 0.0
    %457 = vmatprep.subr.mxu0 0.0
    %458 = vmatpush1.msra.mxu0 0.0
    %459 = vmatprep.subr.mxu0 0.0
    %460 = vmatpush1.msra.mxu0 0.0
    %461 = vmatprep.subr.mxu0 0.0
    %462 = vmatpush1.msra.mxu0 0.0
    %463 = vmatprep.subr.mxu0 0.0
    %464 = vmatpush1.msra.mxu0 0.0
    %465 = vmatprep.subr.mxu0 0.0
    %466 = vmatpush1.msra.mxu0 0.0
    %467 = vmatprep.subr.mxu0 0.0
    %468 = vmatpush1.msra.mxu0 0.0
    %469 = vmatprep.subr.mxu0 0.0
    %470 = vmatpush1.msra.mxu0 0.0
    %471 = vmatprep.subr.mxu0 0.0
    %472 = vmatpush1.msra.mxu0 0.0
    %473 = vmatprep.subr.mxu0 0.0
    %474 = vmatpush1.msra.mxu0 0.0
    %475 = vmatprep.subr.mxu0 0.0
    %476 = vmatpush1.msra.mxu0 0.0
    %477 = vmatprep.mubr.f32.mxu0 0.0
    %478 = vmatmul.mubr.f32.gmra.mrb[0].mxu0 %v407
    %v479 = vpop.f32.mrb[0].mxu0
    %v480 = vadd.f32 0.0, %v479
    %v481 = vpop.f32.mrb[0].mxu0
    %482 = vdwg.mxu0
    %v484 = vsel %vm405, %v400, 0
    %v487 = vsel %vm409, %v404, 0
    %489 = vmatprep.subr.mxu0 0.0
    %490 = vmatpush1.msra.mxu0 %v403
    %491 = vmatprep.subr.mxu0 0.0
    %492 = vmatpush1.msra.mxu0 %v487
    %493 = vmatprep.subr.mxu0 0.0
    %494 = vmatpush1.msra.mxu0 0.0
    %495 = vmatprep.subr.mxu0 0.0
    %496 = vmatpush1.msra.mxu0 0.0
    %497 = vmatprep.subr.mxu0 0.0
    %498 = vmatpush1.msra.mxu0 0.0
    %499 = vmatprep.subr.mxu0 0.0
    %500 = vmatpush1.msra.mxu0 0.0
    %501 = vmatprep.subr.mxu0 0.0
    %502 = vmatpush1.msra.mxu0 0.0
    %503 = vmatprep.subr.mxu0 0.0
    %504 = vmatpush1.msra.mxu0 0.0
    %505 = vmatprep.subr.mxu0 0.0
    %506 = vmatpush1.msra.mxu0 0.0
    %507 = vmatprep.subr.mxu0 0.0
    %508 = vmatpush1.msra.mxu0 0.0
    %509 = vmatprep.subr.mxu0 0.0
    %510 = vmatpush1.msra.mxu0 0.0
    %511 = vmatprep.subr.mxu0 0.0
    %512 = vmatpush1.msra.mxu0 0.0
    %513 = vmatprep.subr.mxu0 0.0
    %514 = vmatpush1.msra.mxu0 0.0
    %515 = vmatprep.subr.mxu0 0.0
    %516 = vmatpush1.msra.mxu0 0.0
    %517 = vmatprep.subr.mxu0 0.0
    %518 = vmatpush1.msra.mxu0 0.0
    %519 = vmatprep.subr.mxu0 0.0
    %520 = vmatpush1.msra.mxu0 0.0
    %521 = vmatprep.subr.mxu0 0.0
    %522 = vmatpush1.msra.mxu0 0.0
    %523 = vmatprep.subr.mxu0 0.0
    %524 = vmatpush1.msra.mxu0 0.0
    %525 = vmatprep.subr.mxu0 0.0
    %526 = vmatpush1.msra.mxu0 0.0
    %527 = vmatprep.subr.mxu0 0.0
    %528 = vmatpush1.msra.mxu0 0.0
    %529 = vmatprep.subr.mxu0 0.0
    %530 = vmatpush1.msra.mxu0 0.0
    %531 = vmatprep.subr.mxu0 0.0
    %532 = vmatpush1.msra.mxu0 0.0
    %533 = vmatprep.subr.mxu0 0.0
    %534 = vmatpush1.msra.mxu0 0.0
    %535 = vmatprep.subr.mxu0 0.0
    %536 = vmatpush1.msra.mxu0 0.0
    %537 = vmatprep.subr.mxu0 0.0
    %538 = vmatpush1.msra.mxu0 0.0
    %539 = vmatprep.subr.mxu0 0.0
    %540 = vmatpush1.msra.mxu0 0.0
    %541 = vmatprep.subr.mxu0 0.0
    %542 = vmatpush1.msra.mxu0 0.0
    %543 = vmatprep.subr.mxu0 0.0
    %544 = vmatpush1.msra.mxu0 0.0
    %545 = vmatprep.subr.mxu0 0.0
    %546 = vmatpush1.msra.mxu0 0.0
    %547 = vmatprep.subr.mxu0 0.0
    %548 = vmatpush1.msra.mxu0 0.0
    %549 = vmatprep.subr.mxu0 0.0
    %550 = vmatpush1.msra.mxu0 0.0
    %551 = vmatprep.subr.mxu0 0.0
    %552 = vmatpush1.msra.mxu0 0.0
    %553 = vmatprep.mubr.f32.mxu0 0.0
    %554 = vmatmul.mubr.f32.gmra.mrb[0].mxu0 %v484
    %v555 = vpop.f32.mrb[0].mxu0
    %v556 = vadd.f32 0.0, %v555
    %v557 = vpop.f32.mrb[0].mxu0
    %558 = vdwg.mxu0
    %559 = vst [vmem:[#allocation10] sm:$0xff] %v480
    %560 = vst [vmem:[#allocation10 + $0x8] sm:$0xff] %v556
    // Predicated region
    $region26: #{tpu_custom_call.1} parent=1 // pred_check
      _
    $region27: #{tpu_custom_call.1} parent=1 // pred_check_branch
      %562 = sbr.rel (0) target = $region29
    $region28: #{tpu_custom_call.1} parent=1 // pred_region
      %s564 = ssub.s32 256, 256
      %565 = vsyncadd [#allocation7], %s564
      %s566 = sshll.u32 [#allocation10], 4
      %s567 = int_to_ptr.vmem [resolvable:$true] %s566
      %572 = dma.vmem_to_hbm [thread:$0]  %s567, 256, %s4, [#allocation7], 128, 128, 8
    $region29: #{tpu_custom_call.1} parent=1 // pred_fallthru
      _
    // Predicated region
    $region30: #{tpu_custom_call.1} parent=1 // pred_check
      _
    $region31: #{tpu_custom_call.1} parent=1 // pred_check_branch
      %574 = sbr.rel (0) target = $region33
    $region32: #{tpu_custom_call.1} parent=1 // pred_region
      %575 = dma.done [#allocation7], 256
    $region33: #{tpu_custom_call.1} parent=1 // pred_fallthru
      _
    %576 = vsyncpa [#allocation6], 1
    %577 = vsyncpa [#allocation9], 1
    %578 = vsyncpa [#allocation7], 1

</llo_original>
